<compile_context>
chip_gen: v5e
topology: v5e:2x2
jax: 0.10.0
libtpu: 0.0.40
codegen_flags: <defaults>
</compile_context>

<pallas_src>
import functools

import jax
import jax.numpy as jnp
from jax.experimental import pallas as pl
from jax.experimental.pallas import tpu as pltpu


# ---------------------------------------------------------------------------
# Kernel
# ---------------------------------------------------------------------------
def _residual_block_kernel(
    x_ref,      # (NB, Cin, TL)           non-overlapping input tile (NCL, L on lanes)
    halo_ref,   # (NB, Cmid, 2)           conv1 halo columns [left, right] (relu'd, masked)
    wsc1_ref,   # (Cout_pad + Cmid, Cin)  [shortcut+bn_sc ; conv1+bn1] stacked on out-chans
    bsc1_ref,   # (Cout_pad + Cmid, 1)    fused biases (f32)
    w2_ref,     # (3, Cmid, Cmid)         conv2 taps k=0,1,2 (BN2-folded)
    b2_ref,     # (Cmid, 1)
    w3_ref,     # (Cout, Cmid)
    b3_ref,     # (Cout, 1)
    o_ref,      # (NB, Cout, TL)
    *,
    seq_len: int,
):
    nb, _, tl = x_ref.shape
    cmid = w2_ref.shape[1]
    cout = o_ref.shape[1]
    cout_pad = wsc1_ref.shape[0] - cmid

    tile = pl.program_id(1)
    # Global column index of every lane of this tile: reproduces Conv1d(padding=1)'s zero
    # padding of its *input* h at the true sequence end and neutralizes right-side padding.
    gcol = tile * tl + jax.lax.broadcasted_iota(jnp.int32, (1, tl), 1)
    in_range = gcol < seq_len

    wsc1 = wsc1_ref[...]
    bsc1 = bsc1_ref[...]
    w2_0 = w2_ref[0]
    w2_1 = w2_ref[1]
    w2_2 = w2_ref[2]
    b2 = b2_ref[...]
    w3 = w3_ref[...]
    b3 = b3_ref[...]

    for b in range(nb):  # small static unroll; NB > 1 only for short spatial tiles
        xb = x_ref[b]                                               # (Cin, TL)

        # shortcut(+bn_sc) and conv1(+bn1) as ONE matmul over the stacked weights.
        hs = jnp.dot(wsc1, xb, preferred_element_type=jnp.float32) + bsc1
        ident = hs[:cout]                                           # (Cout, TL), f32
        h1 = jnp.maximum(hs[cout_pad:], 0.0)                        # (Cmid, TL), f32
        h1 = jnp.where(in_range, h1, 0.0)
        # TODO(synk): dropout is identity (PyTorch eval semantics); training-mode dropout
        #             would use pltpu.prng_seed / pltpu.prng_random_bits here.
        h1c = h1.astype(w2_0.dtype)

        # conv2 (k=3, padding=1) + bn2 as THREE accumulating dots against per-tap weights.
        # The +/-1 shifted activations come from in-tile columns plus the precomputed halo
        # columns -> no haloed input windows and no (3*Cmid, TL) concatenated copy.
        hcols = halo_ref[b]                                         # (Cmid, 2)
        h_prev = jnp.concatenate([hcols[:, 0:1], h1c[:, : tl - 1]], axis=1)
        h_next = jnp.concatenate([h1c[:, 1:], hcols[:, 1:2]], axis=1)

        y = jnp.dot(w2_0, h_prev, preferred_element_type=jnp.float32)
        y = y + jnp.dot(w2_1, h1c, preferred_element_type=jnp.float32)
        y = y + jnp.dot(w2_2, h_next, preferred_element_type=jnp.float32)
        y = jnp.maximum(y + b2, 0.0)                                # (Cmid, TL), f32
        yc = y.astype(w3.dtype)

        # conv3 (k=1) + bn3, residual add, relu. Store is lane-dense (L on the lane axis).
        z = jnp.dot(w3, yc, preferred_element_type=jnp.float32) + b3
        o_ref[b] = jnp.maximum(z + ident, 0.0).astype(o_ref.dtype)


# ---------------------------------------------------------------------------
# Wrapper helpers
# ---------------------------------------------------------------------------
def _fuse_bn(conv_w, conv_b, gamma, beta, mean, var, eps=1e-5):
    """Fold inference-mode BatchNorm1d into the preceding conv's weight/bias."""
    scale = gamma / jnp.sqrt(var + eps)
    if conv_w.ndim == 2:
        w = conv_w * scale[:, None]
    else:
        w = conv_w * scale[:, None, None]
    b = (conv_b - mean) * scale + beta
    return w, b


def _round_up(x, m):
    return (x + m - 1) // m * m


def _pick_tile_l(length, max_tile_l):
    if length <= max_tile_l:
        return length
    # Prefer a 128-multiple tile >= max_tile_l//2 that divides L exactly: avoids both the
    # right-pad of x and the post-call output slice (each an extra HBM pass).
    for cand in range(max_tile_l, max(max_tile_l // 2, 128) - 1, -128):
        if length % cand == 0:
            return cand
    return max_tile_l


def _pick_batch_block(n, tl):
    # Fold several batch samples into one grid step when the spatial tile is short, to
    # amortize the fixed per-grid-step overhead.
    if tl >= 512:
        return 1
    cap = max(1, min(8, 512 // max(tl, 1)))
    for d in range(min(n, cap), 0, -1):
        if n % d == 0:
            return d
    return 1


def _vmem_limit_bytes():
    # ~96 MiB on 128-MiB-VMEM parts (v5e/v6e), ~48 MiB on the 64-MiB v7x core.
    try:
        phys = int(pltpu.get_tpu_info().vmem_capacity_bytes)
    except Exception:
        phys = 64 * 1024 * 1024
    return min(96 * 1024 * 1024, (phys * 3) // 4)


# ---------------------------------------------------------------------------
# Wrapper
# ---------------------------------------------------------------------------
@functools.partial(jax.jit, static_argnames=("compute_dtype", "max_tile_l"))
def residual_block_forward(x_ncl, params, compute_dtype=jnp.float32, max_tile_l=1024):
    """x_ncl: (N, Cin, L) in the PyTorch NCL layout. Returns (N, Cout, L)."""
    assert max_tile_l % 128 == 0

    # ---- fold inference BatchNorm into the convs ----
    w1, b1 = _fuse_bn(params['conv1_w'][:, :, 0], params['conv1_b'],
                      params['bn1_g'], params['bn1_b'], params['bn1_m'], params['bn1_v'])
    w2, b2 = _fuse_bn(params['conv2_w'], params['conv2_b'],
                      params['bn2_g'], params['bn2_b'], params['bn2_m'], params['bn2_v'])
    w3, b3 = _fuse_bn(params['conv3_w'][:, :, 0], params['conv3_b'],
                      params['bn3_g'], params['bn3_b'], params['bn3_m'], params['bn3_v'])
    wsc, bsc = _fuse_bn(params['convsc_w'][:, :, 0], params['convsc_b'],
                        params['bnsc_g'], params['bnsc_b'], params['bnsc_m'], params['bnsc_v'])

    n, cin, length = x_ncl.shape
    cmid = w1.shape[0]
    cout = w3.shape[0]
    cout_pad = _round_up(cout, 8)   # keep the in-kernel hs row-split sublane aligned
    # TODO(synk): for large channel counts, additionally padding Cin/Cmid toward the MXU
    #             depth (128/256) and int8/fp8 weight quantization would raise MXU occupancy.

    # Stacked shortcut+conv1 weights -> one matmul against x inside the kernel.
    wsc_p = jnp.zeros((cout_pad, cin), w1.dtype).at[:cout].set(wsc)
    bsc_p = jnp.zeros((cout_pad,), b1.dtype).at[:cout].set(bsc)
    wsc1 = jnp.concatenate([wsc_p, w1], axis=0).astype(compute_dtype)   # (Cout_pad+Cmid, Cin)
    bsc1 = jnp.concatenate([bsc_p, b1], axis=0)[:, None].astype(jnp.float32)
    w2s = jnp.stack([w2[:, :, 0], w2[:, :, 1], w2[:, :, 2]], axis=0).astype(compute_dtype)
    b2c = b2[:, None].astype(jnp.float32)
    w3c = w3.astype(compute_dtype)
    b3c = b3[:, None].astype(jnp.float32)

    # ---- spatial tiling: plain non-overlapping blocks (no haloed-window copies) ----
    tl = _pick_tile_l(length, max_tile_l)
    num_tiles = pl.cdiv(length, tl)
    l_pad = num_tiles * tl
    nb = _pick_batch_block(n, tl)

    x_in = x_ncl if l_pad == length else jnp.pad(x_ncl, ((0, 0), (0, 0), (0, l_pad - length)))
    x_in = x_in.astype(compute_dtype)

    # ---- tiny per-tile halo columns: conv1 activation at global cols i*TL-1 and i*TL+TL,
    #      BN1-folded, relu'd, zeroed outside [0, L). Negligible HBM traffic (2 cols/tile),
    #      and it removes any need for overlapping views of x. ----
    t_idx = jnp.arange(num_tiles)
    left_idx = t_idx * tl - 1
    right_idx = t_idx * tl + tl
    xl = jnp.take(x_ncl, jnp.clip(left_idx, 0, length - 1), axis=2)      # (N, Cin, T)
    xr = jnp.take(x_ncl, jnp.clip(right_idx, 0, length - 1), axis=2)
    hl = jax.nn.relu(jnp.einsum('mc,nct->nmt', w1, xl.astype(jnp.float32)) + b1[None, :, None])
    hr = jax.nn.relu(jnp.einsum('mc,nct->nmt', w1, xr.astype(jnp.float32)) + b1[None, :, None])
    hl = jnp.where((left_idx >= 0)[None, None, :], hl, 0.0)
    hr = jnp.where((right_idx < length)[None, None, :], hr, 0.0)
    halos = jnp.stack([hl, hr], axis=-1)                                 # (N, Cmid, T, 2)
    halos = jnp.transpose(halos, (0, 2, 1, 3)).astype(compute_dtype)     # (N, T, Cmid, 2)

    itemsize = jnp.dtype(compute_dtype).itemsize
    flops = 2 * n * l_pad * (cin * (cout_pad + cmid) + 3 * cmid * cmid + cmid * cout)
    bytes_accessed = (
        x_in.size * itemsize + n * cout * l_pad * itemsize + halos.size * itemsize
        + (wsc1.size + w2s.size + w3c.size) * itemsize
        + (bsc1.size + b2c.size + b3c.size) * 4)

    kernel = functools.partial(_residual_block_kernel, seq_len=length)

    out = pl.pallas_call(
        kernel,
        out_shape=jax.ShapeDtypeStruct((n, cout, l_pad), compute_dtype),
        grid=(n // nb, num_tiles),
        in_specs=[
            # activations: pipelined, non-overlapping (NB, Cin, TL) blocks
            pl.BlockSpec((nb, cin, tl), lambda bb, i: (bb, 0, i)),
            # per-tile halo columns
            pl.BlockSpec((nb, None, cmid, 2), lambda bb, i: (bb, i, 0, 0)),
            # weights / biases: constant index maps -> resident in VMEM across the grid
            pl.BlockSpec((cout_pad + cmid, cin), lambda bb, i: (0, 0)),
            pl.BlockSpec((cout_pad + cmid, 1), lambda bb, i: (0, 0)),
            pl.BlockSpec((3, cmid, cmid), lambda bb, i: (0, 0, 0)),
            pl.BlockSpec((cmid, 1), lambda bb, i: (0, 0)),
            pl.BlockSpec((cout, cmid), lambda bb, i: (0, 0)),
            pl.BlockSpec((cout, 1), lambda bb, i: (0, 0)),
        ],
        out_specs=pl.BlockSpec((nb, cout, tl), lambda bb, i: (bb, 0, i)),
        compiler_params=pltpu.CompilerParams(
            dimension_semantics=("parallel", "parallel"),
            vmem_limit_bytes=_vmem_limit_bytes()),
        cost_estimate=pl.CostEstimate(
            flops=flops, transcendentals=0, bytes_accessed=bytes_accessed),
    )(x_in, halos, wsc1, bsc1, w2s, b2c, w3c, b3c)

    if l_pad != length:
        out = out[:, :, :length]
    return out


# ---------------------------------------------------------------------------
# Pure-JAX reference (mirrors the PyTorch forward in NCL layout) for checking.
# ---------------------------------------------------------------------------
def _conv1d_ref(x, w, b, padding):
    y = jax.lax.conv_general_dilated(
        x, w, window_strides=(1,), padding=[(padding, padding)],
        dimension_numbers=('NCH', 'OIH', 'NCH'))
    return y + b[None, :, None]


def _bn_ref(x, g, bt, m, v, eps=1e-5):
    return (x - m[None, :, None]) / jnp.sqrt(v[None, :, None] + eps) \
        * g[None, :, None] + bt[None, :, None]


def _reference_forward(x, p):
    identity = _bn_ref(_conv1d_ref(x, p['convsc_w'], p['convsc_b'], 0),
                       p['bnsc_g'], p['bnsc_b'], p['bnsc_m'], p['bnsc_v'])
    h = jax.nn.relu(_bn_ref(_conv1d_ref(x, p['conv1_w'], p['conv1_b'], 0),
                            p['bn1_g'], p['bn1_b'], p['bn1_m'], p['bn1_v']))
    h = jax.nn.relu(_bn_ref(_conv1d_ref(h, p['conv2_w'], p['conv2_b'], 1),
                            p['bn2_g'], p['bn2_b'], p['bn2_m'], p['bn2_v']))
    h = _bn_ref(_conv1d_ref(h, p['conv3_w'], p['conv3_b'], 0),
                p['bn3_g'], p['bn3_b'], p['bn3_m'], p['bn3_v'])
    return jax.nn.relu(h + identity)


def _make_params(key, in_channels, out_channels):
    cmid = out_channels // 2
    keys = jax.random.split(key, 24)
    k = iter(keys)

    def nrm(shape, scale=0.1):
        return jax.random.normal(next(k), shape, dtype=jnp.float32) * scale

    def bn(c):
        return dict(
            g=1.0 + nrm((c,), 0.05),
            b=nrm((c,), 0.05),
            m=nrm((c,), 0.05),
            v=jnp.abs(nrm((c,), 0.1)) + 0.5,
        )

    bn1, bn2, bn3, bnsc = bn(cmid), bn(cmid), bn(out_channels), bn(out_channels)
    return {
        'conv1_w': nrm((cmid, in_channels, 1)), 'conv1_b': nrm((cmid,)),
        'conv2_w': nrm((cmid, cmid, 3)),        'conv2_b': nrm((cmid,)),
        'conv3_w': nrm((out_channels, cmid, 1)), 'conv3_b': nrm((out_channels,)),
        'convsc_w': nrm((out_channels, in_channels, 1)), 'convsc_b': nrm((out_channels,)),
        'bn1_g': bn1['g'], 'bn1_b': bn1['b'], 'bn1_m': bn1['m'], 'bn1_v': bn1['v'],
        'bn2_g': bn2['g'], 'bn2_b': bn2['b'], 'bn2_m': bn2['m'], 'bn2_v': bn2['v'],
        'bn3_g': bn3['g'], 'bn3_b': bn3['b'], 'bn3_m': bn3['m'], 'bn3_v': bn3['v'],
        'bnsc_g': bnsc['g'], 'bnsc_b': bnsc['b'], 'bnsc_m': bnsc['m'], 'bnsc_v': bnsc['v'],
    }


if __name__ == "__main__":
    # x is (batch, in_channels, seq_len) as in PyTorch Conv1d.
    N, C_IN, C_OUT, L = 2, 4, 8, 16

    key = jax.random.PRNGKey(0)
    pkey, xkey, xkey2 = jax.random.split(key, 3)
    params = _make_params(pkey, C_IN, C_OUT)
    x = jax.random.normal(xkey, (N, C_IN, L), dtype=jnp.float32)

    # 1) f32, single spatial tile (short sequence -> batch samples folded into one step).
    out = jax.block_until_ready(residual_block_forward(x, params))
    ref = jax.block_until_ready(_reference_forward(x, params))
    assert out.shape == (N, C_OUT, L), out.shape
    assert jnp.allclose(out, ref, atol=1e-3, rtol=1e-3), \
        f"max abs diff = {jnp.max(jnp.abs(out - ref))}"

    # 2) f32, multi-tile path (exercises the halo columns at L-tile boundaries): L=384.
    L2 = 384
    x2 = jax.random.normal(xkey2, (N, C_IN, L2), dtype=jnp.float32)
    out2 = jax.block_until_ready(residual_block_forward(x2, params, max_tile_l=128))
    ref2 = jax.block_until_ready(_reference_forward(x2, params))
    assert out2.shape == (N, C_OUT, L2), out2.shape
    assert jnp.allclose(out2, ref2, atol=1e-3, rtol=1e-3), \
        f"max abs diff (tiled) = {jnp.max(jnp.abs(out2 - ref2))}"

    # 3) bf16 matmul inputs with f32 accumulation / f32 elementwise.
    out_bf16 = jax.block_until_ready(
        residual_block_forward(x, params, compute_dtype=jnp.bfloat16))
    assert jnp.allclose(out_bf16.astype(jnp.float32), ref, atol=5e-2, rtol=5e-2), \
        f"max abs diff (bf16) = {jnp.max(jnp.abs(out_bf16.astype(jnp.float32) - ref))}"

    print("KERNEL_OK")
</pallas_src>

<mosaic_0001>
module attributes {stable_mosaic.version = 11 : i64} {
  func.func @_residual_block_kernel(%arg0: i32, %arg1: i32, %arg2: memref<2x4x16xf32, #tpu.memory_space<vmem>>, %arg3: memref<2x1x4x2xf32, #tpu.memory_space<vmem>>, %arg4: memref<12x4xf32, #tpu.memory_space<vmem>>, %arg5: memref<12x1xf32, #tpu.memory_space<vmem>>, %arg6: memref<3x4x4xf32, #tpu.memory_space<vmem>>, %arg7: memref<4x1xf32, #tpu.memory_space<vmem>>, %arg8: memref<8x4xf32, #tpu.memory_space<vmem>>, %arg9: memref<8x1xf32, #tpu.memory_space<vmem>>, %arg10: memref<2x8x16xf32, #tpu.memory_space<vmem>>) attributes {dimension_semantics = [#tpu.dimension_semantics<parallel>, #tpu.dimension_semantics<parallel>], iteration_bounds = array<i64: 1, 1>, scalar_prefetch = 0 : i64, scratch_operands = 0 : i64, tpu.core_type = #tpu.core_type<tc>, window_params = [{transform_indices = @transform_0, window_bounds = array<i64: 2, 4, 16>}, {transform_indices = @transform_1, window_bounds = array<i64: 2, 1, 4, 2>}, {pipeline_mode = #tpu.pipeline_mode<synchronous>, transform_indices = @transform_2, window_bounds = array<i64: 12, 4>}, {pipeline_mode = #tpu.pipeline_mode<synchronous>, transform_indices = @transform_3, window_bounds = array<i64: 12, 1>}, {pipeline_mode = #tpu.pipeline_mode<synchronous>, transform_indices = @transform_4, window_bounds = array<i64: 3, 4, 4>}, {pipeline_mode = #tpu.pipeline_mode<synchronous>, transform_indices = @transform_5, window_bounds = array<i64: 4, 1>}, {pipeline_mode = #tpu.pipeline_mode<synchronous>, transform_indices = @transform_6, window_bounds = array<i64: 8, 4>}, {pipeline_mode = #tpu.pipeline_mode<synchronous>, transform_indices = @transform_7, window_bounds = array<i64: 8, 1>}, {transform_indices = @transform_8, window_bounds = array<i64: 2, 8, 16>}]} {
    %c16_i32 = arith.constant 16 : i32
    %0 = arith.muli %arg1, %c16_i32 : i32
    %1 = tpu.iota {dimensions = array<i32: 1>} : vector<1x16xi32>
    %2 = vector.broadcast %0 : i32 to vector<1x16xi32>
    %3 = arith.addi %2, %1 : vector<1x16xi32>
    %c16_i32_0 = arith.constant 16 : i32
    %4 = vector.broadcast %c16_i32_0 : i32 to vector<1x16xi32>
    %5 = arith.cmpi slt, %3, %4 : vector<1x16xi32>
    %c0 = arith.constant 0 : index
    %c0_1 = arith.constant 0 : index
    %6 = vector.load %arg4[%c0, %c0_1] : memref<12x4xf32, #tpu.memory_space<vmem>>, vector<12x4xf32>
    %c0_2 = arith.constant 0 : index
    %c0_3 = arith.constant 0 : index
    %7 = vector.load %arg5[%c0_2, %c0_3] : memref<12x1xf32, #tpu.memory_space<vmem>>, vector<12x1xf32>
    %c0_4 = arith.constant 0 : index
    %c0_5 = arith.constant 0 : index
    %c0_6 = arith.constant 0 : index
    %8 = vector.load %arg6[%c0_4, %c0_5, %c0_6] : memref<3x4x4xf32, #tpu.memory_space<vmem>>, vector<1x4x4xf32>
    %9 = vector.shape_cast %8 : vector<1x4x4xf32> to vector<4x4xf32>
    %c1 = arith.constant 1 : index
    %c0_7 = arith.constant 0 : index
    %c0_8 = arith.constant 0 : index
    %10 = vector.load %arg6[%c1, %c0_7, %c0_8] : memref<3x4x4xf32, #tpu.memory_space<vmem>>, vector<1x4x4xf32>
    %11 = vector.shape_cast %10 : vector<1x4x4xf32> to vector<4x4xf32>
    %c2 = arith.constant 2 : index
    %c0_9 = arith.constant 0 : index
    %c0_10 = arith.constant 0 : index
    %12 = vector.load %arg6[%c2, %c0_9, %c0_10] : memref<3x4x4xf32, #tpu.memory_space<vmem>>, vector<1x4x4xf32>
    %13 = vector.shape_cast %12 : vector<1x4x4xf32> to vector<4x4xf32>
    %c0_11 = arith.constant 0 : index
    %c0_12 = arith.constant 0 : index
    %14 = vector.load %arg7[%c0_11, %c0_12] : memref<4x1xf32, #tpu.memory_space<vmem>>, vector<4x1xf32>
    %c0_13 = arith.constant 0 : index
    %c0_14 = arith.constant 0 : index
    %15 = vector.load %arg8[%c0_13, %c0_14] : memref<8x4xf32, #tpu.memory_space<vmem>>, vector<8x4xf32>
    %c0_15 = arith.constant 0 : index
    %c0_16 = arith.constant 0 : index
    %16 = vector.load %arg9[%c0_15, %c0_16] : memref<8x1xf32, #tpu.memory_space<vmem>>, vector<8x1xf32>
    %c0_17 = arith.constant 0 : index
    %c0_18 = arith.constant 0 : index
    %c0_19 = arith.constant 0 : index
    %17 = vector.load %arg2[%c0_17, %c0_18, %c0_19] : memref<2x4x16xf32, #tpu.memory_space<vmem>>, vector<1x4x16xf32>
    %18 = vector.shape_cast %17 : vector<1x4x16xf32> to vector<4x16xf32>
    %cst = arith.constant dense<0.000000e+00> : vector<12x16xf32>
    %19 = tpu.matmul %6, %18, %cst {dimension_numbers = #tpu.dot_dimension_numbers<[1], [0], [0], [1], [0, 0, 1, 1], [], []>} : vector<12x4xf32>, vector<4x16xf32>, vector<12x16xf32> -> vector<12x16xf32>
    %20 = vector.broadcast %7 : vector<12x1xf32> to vector<12x16xf32>
    %21 = arith.addf %19, %20 : vector<12x16xf32>
    %22 = vector.extract_strided_slice %21 {offsets = [0, 0], sizes = [8, 16], strides = [1, 1]} : vector<12x16xf32> to vector<8x16xf32>
    %23 = vector.extract_strided_slice %21 {offsets = [8, 0], sizes = [4, 16], strides = [1, 1]} : vector<12x16xf32> to vector<4x16xf32>
    %cst_20 = arith.constant 0.000000e+00 : f32
    %24 = vector.broadcast %cst_20 : f32 to vector<4x16xf32>
    %25 = arith.maximumf %23, %24 : vector<4x16xf32>
    %cst_21 = arith.constant 0.000000e+00 : f32
    %26 = vector.shape_cast %5 : vector<1x16xi1> to vector<1x16xi1>
    %27 = vector.broadcast %26 : vector<1x16xi1> to vector<4x16xi1>
    %28 = vector.broadcast %cst_21 : f32 to vector<4x16xf32>
    %29 = arith.select %27, %25, %28 : vector<4x16xi1>, vector<4x16xf32>
    %c0_22 = arith.constant 0 : index
    %c0_23 = arith.constant 0 : index
    %c0_24 = arith.constant 0 : index
    %c0_25 = arith.constant 0 : index
    %30 = vector.load %arg3[%c0_22, %c0_23, %c0_24, %c0_25] : memref<2x1x4x2xf32, #tpu.memory_space<vmem>>, vector<1x1x4x2xf32>
    %31 = vector.shape_cast %30 : vector<1x1x4x2xf32> to vector<4x2xf32>
    %32 = vector.extract_strided_slice %31 {offsets = [0, 0], sizes = [4, 1], strides = [1, 1]} : vector<4x2xf32> to vector<4x1xf32>
    %33 = vector.extract_strided_slice %29 {offsets = [0, 0], sizes = [4, 15], strides = [1, 1]} : vector<4x16xf32> to vector<4x15xf32>
    %34 = tpu.concatenate %32, %33 in 1 : vector<4x1xf32>, vector<4x15xf32> -> vector<4x16xf32>
    %35 = vector.extract_strided_slice %29 {offsets = [0, 1], sizes = [4, 15], strides = [1, 1]} : vector<4x16xf32> to vector<4x15xf32>
    %36 = vector.extract_strided_slice %31 {offsets = [0, 1], sizes = [4, 1], strides = [1, 1]} : vector<4x2xf32> to vector<4x1xf32>
    %37 = tpu.concatenate %35, %36 in 1 : vector<4x15xf32>, vector<4x1xf32> -> vector<4x16xf32>
    %cst_26 = arith.constant dense<0.000000e+00> : vector<4x16xf32>
    %38 = tpu.matmul %9, %34, %cst_26 {dimension_numbers = #tpu.dot_dimension_numbers<[1], [0], [0], [1], [0, 0, 1, 1], [], []>} : vector<4x4xf32>, vector<4x16xf32>, vector<4x16xf32> -> vector<4x16xf32>
    %cst_27 = arith.constant dense<0.000000e+00> : vector<4x16xf32>
    %39 = tpu.matmul %11, %29, %cst_27 {dimension_numbers = #tpu.dot_dimension_numbers<[1], [0], [0], [1], [0, 0, 1, 1], [], []>} : vector<4x4xf32>, vector<4x16xf32>, vector<4x16xf32> -> vector<4x16xf32>
    %40 = arith.addf %38, %39 : vector<4x16xf32>
    %cst_28 = arith.constant dense<0.000000e+00> : vector<4x16xf32>
    %41 = tpu.matmul %13, %37, %cst_28 {dimension_numbers = #tpu.dot_dimension_numbers<[1], [0], [0], [1], [0, 0, 1, 1], [], []>} : vector<4x4xf32>, vector<4x16xf32>, vector<4x16xf32> -> vector<4x16xf32>
    %42 = arith.addf %40, %41 : vector<4x16xf32>
    %43 = vector.broadcast %14 : vector<4x1xf32> to vector<4x16xf32>
    %44 = arith.addf %42, %43 : vector<4x16xf32>
    %cst_29 = arith.constant 0.000000e+00 : f32
    %45 = vector.broadcast %cst_29 : f32 to vector<4x16xf32>
    %46 = arith.maximumf %44, %45 : vector<4x16xf32>
    %cst_30 = arith.constant dense<0.000000e+00> : vector<8x16xf32>
    %47 = tpu.matmul %15, %46, %cst_30 {dimension_numbers = #tpu.dot_dimension_numbers<[1], [0], [0], [1], [0, 0, 1, 1], [], []>} : vector<8x4xf32>, vector<4x16xf32>, vector<8x16xf32> -> vector<8x16xf32>
    %48 = vector.broadcast %16 : vector<8x1xf32> to vector<8x16xf32>
    %49 = arith.addf %47, %48 : vector<8x16xf32>
    %50 = arith.addf %49, %22 : vector<8x16xf32>
    %cst_31 = arith.constant 0.000000e+00 : f32
    %51 = vector.broadcast %cst_31 : f32 to vector<8x16xf32>
    %52 = arith.maximumf %50, %51 : vector<8x16xf32>
    %c0_32 = arith.constant 0 : index
    %c0_33 = arith.constant 0 : index
    %c0_34 = arith.constant 0 : index
    %53 = vector.load %arg10[%c0_32, %c0_33, %c0_34] : memref<2x8x16xf32, #tpu.memory_space<vmem>>, vector<1x8x16xf32>
    %54 = vector.shape_cast %53 : vector<1x8x16xf32> to vector<8x16xf32>
    %55 = vector.shape_cast %52 : vector<8x16xf32> to vector<1x8x16xf32>
    tpu.vector_store %arg10[%c0_32, %c0_33, %c0_34], %55 {strides = array<i32>} : memref<2x8x16xf32, #tpu.memory_space<vmem>>, vector<1x8x16xf32>,
    %c1_35 = arith.constant 1 : index
    %c0_36 = arith.constant 0 : index
    %c0_37 = arith.constant 0 : index
    %56 = vector.load %arg2[%c1_35, %c0_36, %c0_37] : memref<2x4x16xf32, #tpu.memory_space<vmem>>, vector<1x4x16xf32>
    %57 = vector.shape_cast %56 : vector<1x4x16xf32> to vector<4x16xf32>
    %cst_38 = arith.constant dense<0.000000e+00> : vector<12x16xf32>
    %58 = tpu.matmul %6, %57, %cst_38 {dimension_numbers = #tpu.dot_dimension_numbers<[1], [0], [0], [1], [0, 0, 1, 1], [], []>} : vector<12x4xf32>, vector<4x16xf32>, vector<12x16xf32> -> vector<12x16xf32>
    %59 = vector.broadcast %7 : vector<12x1xf32> to vector<12x16xf32>
    %60 = arith.addf %58, %59 : vector<12x16xf32>
    %61 = vector.extract_strided_slice %60 {offsets = [0, 0], sizes = [8, 16], strides = [1, 1]} : vector<12x16xf32> to vector<8x16xf32>
    %62 = vector.extract_strided_slice %60 {offsets = [8, 0], sizes = [4, 16], strides = [1, 1]} : vector<12x16xf32> to vector<4x16xf32>
    %cst_39 = arith.constant 0.000000e+00 : f32
    %63 = vector.broadcast %cst_39 : f32 to vector<4x16xf32>
    %64 = arith.maximumf %62, %63 : vector<4x16xf32>
    %cst_40 = arith.constant 0.000000e+00 : f32
    %65 = vector.shape_cast %5 : vector<1x16xi1> to vector<1x16xi1>
    %66 = vector.broadcast %65 : vector<1x16xi1> to vector<4x16xi1>
    %67 = vector.broadcast %cst_40 : f32 to vector<4x16xf32>
    %68 = arith.select %66, %64, %67 : vector<4x16xi1>, vector<4x16xf32>
    %c1_41 = arith.constant 1 : index
    %c0_42 = arith.constant 0 : index
    %c0_43 = arith.constant 0 : index
    %c0_44 = arith.constant 0 : index
    %69 = vector.load %arg3[%c1_41, %c0_42, %c0_43, %c0_44] : memref<2x1x4x2xf32, #tpu.memory_space<vmem>>, vector<1x1x4x2xf32>
    %70 = vector.shape_cast %69 : vector<1x1x4x2xf32> to vector<4x2xf32>
    %71 = vector.extract_strided_slice %70 {offsets = [0, 0], sizes = [4, 1], strides = [1, 1]} : vector<4x2xf32> to vector<4x1xf32>
    %72 = vector.extract_strided_slice %68 {offsets = [0, 0], sizes = [4, 15], strides = [1, 1]} : vector<4x16xf32> to vector<4x15xf32>
    %73 = tpu.concatenate %71, %72 in 1 : vector<4x1xf32>, vector<4x15xf32> -> vector<4x16xf32>
    %74 = vector.extract_strided_slice %68 {offsets = [0, 1], sizes = [4, 15], strides = [1, 1]} : vector<4x16xf32> to vector<4x15xf32>
    %75 = vector.extract_strided_slice %70 {offsets = [0, 1], sizes = [4, 1], strides = [1, 1]} : vector<4x2xf32> to vector<4x1xf32>
    %76 = tpu.concatenate %74, %75 in 1 : vector<4x15xf32>, vector<4x1xf32> -> vector<4x16xf32>
    %cst_45 = arith.constant dense<0.000000e+00> : vector<4x16xf32>
    %77 = tpu.matmul %9, %73, %cst_45 {dimension_numbers = #tpu.dot_dimension_numbers<[1], [0], [0], [1], [0, 0, 1, 1], [], []>} : vector<4x4xf32>, vector<4x16xf32>, vector<4x16xf32> -> vector<4x16xf32>
    %cst_46 = arith.constant dense<0.000000e+00> : vector<4x16xf32>
    %78 = tpu.matmul %11, %68, %cst_46 {dimension_numbers = #tpu.dot_dimension_numbers<[1], [0], [0], [1], [0, 0, 1, 1], [], []>} : vector<4x4xf32>, vector<4x16xf32>, vector<4x16xf32> -> vector<4x16xf32>
    %79 = arith.addf %77, %78 : vector<4x16xf32>
    %cst_47 = arith.constant dense<0.000000e+00> : vector<4x16xf32>
    %80 = tpu.matmul %13, %76, %cst_47 {dimension_numbers = #tpu.dot_dimension_numbers<[1], [0], [0], [1], [0, 0, 1, 1], [], []>} : vector<4x4xf32>, vector<4x16xf32>, vector<4x16xf32> -> vector<4x16xf32>
    %81 = arith.addf %79, %80 : vector<4x16xf32>
    %82 = vector.broadcast %14 : vector<4x1xf32> to vector<4x16xf32>
    %83 = arith.addf %81, %82 : vector<4x16xf32>
    %cst_48 = arith.constant 0.000000e+00 : f32
    %84 = vector.broadcast %cst_48 : f32 to vector<4x16xf32>
    %85 = arith.maximumf %83, %84 : vector<4x16xf32>
    %cst_49 = arith.constant dense<0.000000e+00> : vector<8x16xf32>
    %86 = tpu.matmul %15, %85, %cst_49 {dimension_numbers = #tpu.dot_dimension_numbers<[1], [0], [0], [1], [0, 0, 1, 1], [], []>} : vector<8x4xf32>, vector<4x16xf32>, vector<8x16xf32> -> vector<8x16xf32>
    %87 = vector.broadcast %16 : vector<8x1xf32> to vector<8x16xf32>
    %88 = arith.addf %86, %87 : vector<8x16xf32>
    %89 = arith.addf %88, %61 : vector<8x16xf32>
    %cst_50 = arith.constant 0.000000e+00 : f32
    %90 = vector.broadcast %cst_50 : f32 to vector<8x16xf32>
    %91 = arith.maximumf %89, %90 : vector<8x16xf32>
    %c1_51 = arith.constant 1 : index
    %c0_52 = arith.constant 0 : index
    %c0_53 = arith.constant 0 : index
    %92 = vector.load %arg10[%c1_51, %c0_52, %c0_53] : memref<2x8x16xf32, #tpu.memory_space<vmem>>, vector<1x8x16xf32>
    %93 = vector.shape_cast %92 : vector<1x8x16xf32> to vector<8x16xf32>
    %94 = vector.shape_cast %91 : vector<8x16xf32> to vector<1x8x16xf32>
    tpu.vector_store %arg10[%c1_51, %c0_52, %c0_53], %94 {strides = array<i32>} : memref<2x8x16xf32, #tpu.memory_space<vmem>>, vector<1x8x16xf32>,
    return
  }
  func.func @transform_0(%arg0: i32, %arg1: i32) -> (i32, i32, i32) {
    %c0_i32 = arith.constant 0 : i32
    %c0_i32_0 = arith.constant 0 : i32
    return %arg0, %c0_i32, %arg1 : i32, i32, i32
  }
  func.func @transform_1(%arg0: i32, %arg1: i32) -> (i32, i32, i32, i32) {
    %c0_i32 = arith.constant 0 : i32
    %c0_i32_0 = arith.constant 0 : i32
    %c0_i32_1 = arith.constant 0 : i32
    return %arg0, %arg1, %c0_i32, %c0_i32_0 : i32, i32, i32, i32
  }
  func.func @transform_2(%arg0: i32, %arg1: i32) -> (i32, i32) {
    %c0_i32 = arith.constant 0 : i32
    %c0_i32_0 = arith.constant 0 : i32
    %c0_i32_1 = arith.constant 0 : i32
    return %c0_i32, %c0_i32_0 : i32, i32
  }
  func.func @transform_3(%arg0: i32, %arg1: i32) -> (i32, i32) {
    %c0_i32 = arith.constant 0 : i32
    %c0_i32_0 = arith.constant 0 : i32
    %c0_i32_1 = arith.constant 0 : i32
    return %c0_i32, %c0_i32_0 : i32, i32
  }
  func.func @transform_4(%arg0: i32, %arg1: i32) -> (i32, i32, i32) {
    %c0_i32 = arith.constant 0 : i32
    %c0_i32_0 = arith.constant 0 : i32
    %c0_i32_1 = arith.constant 0 : i32
    %c0_i32_2 = arith.constant 0 : i32
    return %c0_i32, %c0_i32_0, %c0_i32_1 : i32, i32, i32
  }
  func.func @transform_5(%arg0: i32, %arg1: i32) -> (i32, i32) {
    %c0_i32 = arith.constant 0 : i32
    %c0_i32_0 = arith.constant 0 : i32
    %c0_i32_1 = arith.constant 0 : i32
    return %c0_i32, %c0_i32_0 : i32, i32
  }
  func.func @transform_6(%arg0: i32, %arg1: i32) -> (i32, i32) {
    %c0_i32 = arith.constant 0 : i32
    %c0_i32_0 = arith.constant 0 : i32
    %c0_i32_1 = arith.constant 0 : i32
    return %c0_i32, %c0_i32_0 : i32, i32
  }
  func.func @transform_7(%arg0: i32, %arg1: i32) -> (i32, i32) {
    %c0_i32 = arith.constant 0 : i32
    %c0_i32_0 = arith.constant 0 : i32
    %c0_i32_1 = arith.constant 0 : i32
    return %c0_i32, %c0_i32_0 : i32, i32
  }
  func.func @transform_8(%arg0: i32, %arg1: i32) -> (i32, i32, i32) {
    %c0_i32 = arith.constant 0 : i32
    %c0_i32_0 = arith.constant 0 : i32
    return %arg0, %c0_i32, %arg1 : i32, i32, i32
  }
}

</mosaic_0001>

<llo_original>
// kernel: residual_block_forward.1
$region0: #{residual_block_forward.1}
  #allocation0 [shape = 'u32[]', space=smem, size = 0x4, offset = 0x4, fixed_abs, tag = 'smem constant byte address 0x4 - core index']
  #allocation1 [shape = 'u32[72,128]{1,0:T(1,128)}', space=vmem, size = 0x9000, scoped, tag = 'internal scratch']
  %s0 = inlined_call_operand.vmem [shape: f32[2,4,16], index: 0, kind: input, shape index: {}]
  %s1 = inlined_call_operand.vmem [shape: f32[2,1,4,2], index: 1, kind: input, shape index: {}]
  %s2 = inlined_call_operand.vmem [shape: f32[12,4], index: 2, kind: input, shape index: {}]
  %s3 = inlined_call_operand.vmem [shape: f32[12,1], index: 3, kind: input, shape index: {}]
  %s4 = inlined_call_operand.vmem [shape: f32[3,4,4], index: 4, kind: input, shape index: {}]
  %s5 = inlined_call_operand.vmem [shape: f32[4,1], index: 5, kind: input, shape index: {}]
  %s6 = inlined_call_operand.vmem [shape: f32[8,4], index: 6, kind: input, shape index: {}]
  %s7 = inlined_call_operand.vmem [shape: f32[8,1], index: 7, kind: input, shape index: {}]
  %s8 = inlined_call_operand.hbm [shape: f32[2,8,16], index: 8, kind: output, shape index: {}]
  %s9 = sld [smem:[#allocation0]]
  $region42: #{residual_block_forward.1} parent=0
    _
  %s11 = ssub.s32 1, %s9
  %s12 = scalar_select 0, %s11, %s9
  $region1: #{residual_block_forward.1} parent=0
    #allocation2 [shape = 'u8[8192]{0}', space=vmem, size = 0x2000, scoped, tag = 'output window, operand 0, single buffered']
    #allocation3 [shape = 's32[1]{0}', space=sflag, size = 0x4, scoped, tag = 'scoped memory for residual_block_forward.1']
    %13 = vsyncpa [#allocation3], 0
    // Predicated region
    $region2: #{residual_block_forward.1} parent=1 // pred_check
      _
    $region3: #{residual_block_forward.1} parent=1 // pred_check_branch
      %15 = sbr.rel (0) target = $region5
    $region4: #{residual_block_forward.1} parent=1 // pred_region
      _
    $region5: #{residual_block_forward.1} parent=1 // pred_fallthru
      _
    // Predicated region
    $region6: #{residual_block_forward.1} parent=1 // pred_check
      _
    $region7: #{residual_block_forward.1} parent=1 // pred_check_branch
      %17 = sbr.rel (0) target = $region9
    $region8: #{residual_block_forward.1} parent=1 // pred_region
      _
    $region9: #{residual_block_forward.1} parent=1 // pred_fallthru
      _
    // Predicated region
    $region10: #{residual_block_forward.1} parent=1 // pred_check
      _
    $region11: #{residual_block_forward.1} parent=1 // pred_check_branch
      %19 = sbr.rel (0) target = $region13
    $region12: #{residual_block_forward.1} parent=1 // pred_region
      _
    $region13: #{residual_block_forward.1} parent=1 // pred_fallthru
      _
    // Predicated region
    $region14: #{residual_block_forward.1} parent=1 // pred_check
      _
    $region15: #{residual_block_forward.1} parent=1 // pred_check_branch
      %21 = sbr.rel (0) target = $region17
    $region16: #{residual_block_forward.1} parent=1 // pred_region
      _
    $region17: #{residual_block_forward.1} parent=1 // pred_fallthru
      _
    // Predicated region
    $region18: #{residual_block_forward.1} parent=1 // pred_check
      _
    $region19: #{residual_block_forward.1} parent=1 // pred_check_branch
      %23 = sbr.rel (0) target = $region21
    $region20: #{residual_block_forward.1} parent=1 // pred_region
      _
    $region21: #{residual_block_forward.1} parent=1 // pred_fallthru
      _
    // Predicated region
    $region22: #{residual_block_forward.1} parent=1 // pred_check
      _
    $region23: #{residual_block_forward.1} parent=1 // pred_check_branch
      %25 = sbr.rel (0) target = $region25
    $region24: #{residual_block_forward.1} parent=1 // pred_region
      _
    $region25: #{residual_block_forward.1} parent=1 // pred_fallthru
      _
    // Predicated region
    $region26: #{residual_block_forward.1} parent=1 // pred_check
      _
    $region27: #{residual_block_forward.1} parent=1 // pred_check_branch
      %27 = sbr.rel (0) target = $region29
    $region28: #{residual_block_forward.1} parent=1 // pred_region
      _
    $region29: #{residual_block_forward.1} parent=1 // pred_fallthru
      _
    // Predicated region
    $region30: #{residual_block_forward.1} parent=1 // pred_check
      _
    $region31: #{residual_block_forward.1} parent=1 // pred_check_branch
      %29 = sbr.rel (0) target = $region33
    $region32: #{residual_block_forward.1} parent=1 // pred_region
      _
    $region33: #{residual_block_forward.1} parent=1 // pred_fallthru
      _
    %s30 = smul.u32 0, 16
    %v31 = vlaneseq
    %v32 = vand.u32 %v31, 127
    %v33 = vstv %s30
    %v34 = vadd.s32 %v33, %v32
    %vm35 = vcmp.lt.s32.totalorder %v34, 16
    %v36 = vld [vmem:[%s2] sm:$0xff]
    %v37 = vld [vmem:[%s2 + $0x8] sm:$0xf]
    %v38 = vld [vmem:[%s3] sm:$0xff]
    %v39 = vld [vmem:[%s3 + $0x8] sm:$0xf]
    %v40 = vld [vmem:[%s4] sm:$0xf]
    %s41 = scalar_lea.vmem %s4, 4
    %v42 = vld [vmem:[%s41] sm:$0xf]
    %s43 = scalar_lea.vmem %s4, 8
    %v44 = vld [vmem:[%s43] sm:$0xf]
    %v45 = vld [vmem:[%s5] sm:$0xf]
    %v46 = vld [vmem:[%s6] sm:$0xff]
    %v47 = vld [vmem:[%s7] sm:$0xff]
    %v48 = vld [vmem:[%s0] sm:$0xf]
    %50 = vset.pattern.permute.xlu0 0
    %51 = vperm.xlu0 %50, %v38
    %v52 = vpop.permute.xlu0 %51
    %55 = vset.pattern.permute.xlu0 0
    %56 = vperm.xlu0 %55, %v39
    %v57 = vpop.permute.xlu0 %56
    %vm59 = vcmask 31744
    %v61 = vsel %vm59, %v36, 0
    %v64 = vsel %vm59, %v37, 0
    %vm66 = vcmask 1043456
    %v68 = vsel %vm66, %v48, 0
    %70 = vmatpush.msra.mxu0 0.0
    %71 = vmatpush.msra.mxu0 0.0
    %72 = vmatpush.msra.mxu0 0.0
    %73 = vmatpush.msra.mxu0 0.0
    %74 = vmatpush.msra.mxu0 0.0
    %75 = vmatpush.msra.mxu0 0.0
    %76 = vmatpush.msra.mxu0 0.0
    %77 = vmatpush.msra.mxu0 0.0
    %78 = vmatpush.msra.mxu0 0.0
    %79 = vmatpush.msra.mxu0 0.0
    %80 = vmatpush.msra.mxu0 0.0
    %81 = vmatpush.msra.mxu0 0.0
    %82 = vmatpush.msra.mxu0 0.0
    %83 = vmatpush.msra.mxu0 0.0
    %84 = vmatpush.msra.mxu0 0.0
    %85 = vmatpush.msra.mxu0 %v68
    %86 = vmatmul.f32.gmra.mxu0 %v61
    %v87 = vpop.f32.mrf.mxu0
    %v88 = vadd.f32 %v52, %v87
    %89 = vmatmul.f32.gmra.mxu0 %v64
    %v90 = vpop.f32.mrf.mxu0
    %v91 = vadd.f32 %v57, %v90
    %92 = vdwg.mxu0
    %v93 = vmax.f32 %v91, 0.0
    %v94 = vsel %vm35, 1, 0
    %vm95 = vcmp.eq.s32.totalorder %v94, 1
    %v96 = vsel %vm95, %v93, 0.0
    %v97 = vld [vmem:[%s1] sm:$0xf]
    %99 = vrot.lane.b32.xlu0 %v96, 1
    %v100 = vpop.permute.xlu0 %99
    %vm102 = vcmask 7168
    %v103 = vsel %vm102, %v97, %v100
    %104 = vrot.lane.b32.xlu0 %v96, 127
    %v105 = vpop.permute.xlu0 %104
    %108 = vrot.lane.b32.xlu0 %v97, 14
    %v109 = vpop.permute.xlu0 %108
    %vm111 = vcmask 121856
    %v112 = vsel %vm111, %v105, %v109
    %v114 = vsel %vm59, %v42, 0
    %v116 = vsel %vm66, %v96, 0
    %118 = vmatpush.msra.mxu0 0.0
    %119 = vmatpush.msra.mxu0 0.0
    %120 = vmatpush.msra.mxu0 0.0
    %121 = vmatpush.msra.mxu0 0.0
    %122 = vmatpush.msra.mxu0 0.0
    %123 = vmatpush.msra.mxu0 0.0
    %124 = vmatpush.msra.mxu0 0.0
    %125 = vmatpush.msra.mxu0 0.0
    %126 = vmatpush.msra.mxu0 0.0
    %127 = vmatpush.msra.mxu0 0.0
    %128 = vmatpush.msra.mxu0 0.0
    %129 = vmatpush.msra.mxu0 0.0
    %130 = vmatpush.msra.mxu0 0.0
    %131 = vmatpush.msra.mxu0 0.0
    %132 = vmatpush.msra.mxu0 0.0
    %133 = vmatpush.msra.mxu0 %v116
    %134 = vmatmul.f32.gmra.mxu0 %v114
    %v135 = vpop.f32.mrf.mxu0
    %v136 = vadd.f32 0.0, %v135
    %137 = vdwg.mxu0
    %v139 = vsel %vm59, %v40, 0
    %v142 = vsel %vm66, %v103, 0
    %144 = vmatpush.msra.mxu0 0.0
    %145 = vmatpush.msra.mxu0 0.0
    %146 = vmatpush.msra.mxu0 0.0
    %147 = vmatpush.msra.mxu0 0.0
    %148 = vmatpush.msra.mxu0 0.0
    %149 = vmatpush.msra.mxu0 0.0
    %150 = vmatpush.msra.mxu0 0.0
    %151 = vmatpush.msra.mxu0 0.0
    %152 = vmatpush.msra.mxu0 0.0
    %153 = vmatpush.msra.mxu0 0.0
    %154 = vmatpush.msra.mxu0 0.0
    %155 = vmatpush.msra.mxu0 0.0
    %156 = vmatpush.msra.mxu0 0.0
    %157 = vmatpush.msra.mxu0 0.0
    %158 = vmatpush.msra.mxu0 0.0
    %159 = vmatpush.msra.mxu0 %v142
    %160 = vmatmul.f32.gmra.mxu0 %v139
    %v161 = vpop.f32.mrf.mxu0
    %v162 = vadd.f32 %v136, %v161
    %163 = vdwg.mxu0
    %v165 = vsel %vm59, %v44, 0
    %v168 = vsel %vm66, %v112, 0
    %170 = vmatpush.msra.mxu0 0.0
    %171 = vmatpush.msra.mxu0 0.0
    %172 = vmatpush.msra.mxu0 0.0
    %173 = vmatpush.msra.mxu0 0.0
    %174 = vmatpush.msra.mxu0 0.0
    %175 = vmatpush.msra.mxu0 0.0
    %176 = vmatpush.msra.mxu0 0.0
    %177 = vmatpush.msra.mxu0 0.0
    %178 = vmatpush.msra.mxu0 0.0
    %179 = vmatpush.msra.mxu0 0.0
    %180 = vmatpush.msra.mxu0 0.0
    %181 = vmatpush.msra.mxu0 0.0
    %182 = vmatpush.msra.mxu0 0.0
    %183 = vmatpush.msra.mxu0 0.0
    %184 = vmatpush.msra.mxu0 0.0
    %185 = vmatpush.msra.mxu0 %v168
    %186 = vmatmul.f32.gmra.mxu0 %v165
    %v187 = vpop.f32.mrf.mxu0
    %v188 = vadd.f32 0.0, %v187
    %189 = vdwg.mxu0
    %v190 = vadd.f32 %v162, %v188
    %192 = vset.pattern.permute.xlu0 0
    %193 = vperm.xlu0 %192, %v45
    %v194 = vpop.permute.xlu0 %193
    %v196 = vadd.f32 %v190, %v194
    %v197 = vmax.f32 %v196, 0.0
    %199 = vset.pattern.permute.xlu0 0
    %200 = vperm.xlu0 %199, %v47
    %v201 = vpop.permute.xlu0 %200
    %v204 = vsel %vm59, %v46, 0
    %v207 = vsel %vm66, %v197, 0
    %209 = vmatpush.msra.mxu0 0.0
    %210 = vmatpush.msra.mxu0 0.0
    %211 = vmatpush.msra.mxu0 0.0
    %212 = vmatpush.msra.mxu0 0.0
    %213 = vmatpush.msra.mxu0 0.0
    %214 = vmatpush.msra.mxu0 0.0
    %215 = vmatpush.msra.mxu0 0.0
    %216 = vmatpush.msra.mxu0 0.0
    %217 = vmatpush.msra.mxu0 0.0
    %218 = vmatpush.msra.mxu0 0.0
    %219 = vmatpush.msra.mxu0 0.0
    %220 = vmatpush.msra.mxu0 0.0
    %221 = vmatpush.msra.mxu0 0.0
    %222 = vmatpush.msra.mxu0 0.0
    %223 = vmatpush.msra.mxu0 0.0
    %224 = vmatpush.msra.mxu0 %v207
    %225 = vmatmul.f32.gmra.mxu0 %v204
    %v226 = vpop.f32.mrf.mxu0
    %v227 = vadd.f32 %v201, %v226
    %228 = vdwg.mxu0
    %v229 = vadd.f32 %v227, %v88
    %v230 = vmax.f32 %v229, 0.0
    %vm231 = vcmask 130048
    %232 = vst.msk [vmem:[#allocation2] sm:$0xff] %vm231, %v230
    %s233 = scalar_lea.vmem %s0, 4
    %v234 = vld [vmem:[%s233] sm:$0xf]
    %v236 = vsel %vm66, %v234, 0
    %238 = vmatpush.msra.mxu0 0.0
    %239 = vmatpush.msra.mxu0 0.0
    %240 = vmatpush.msra.mxu0 0.0
    %241 = vmatpush.msra.mxu0 0.0
    %242 = vmatpush.msra.mxu0 0.0
    %243 = vmatpush.msra.mxu0 0.0
    %244 = vmatpush.msra.mxu0 0.0
    %245 = vmatpush.msra.mxu0 0.0
    %246 = vmatpush.msra.mxu0 0.0
    %247 = vmatpush.msra.mxu0 0.0
    %248 = vmatpush.msra.mxu0 0.0
    %249 = vmatpush.msra.mxu0 0.0
    %250 = vmatpush.msra.mxu0 0.0
    %251 = vmatpush.msra.mxu0 0.0
    %252 = vmatpush.msra.mxu0 0.0
    %253 = vmatpush.msra.mxu0 %v236
    %254 = vmatmul.f32.gmra.mxu0 %v61
    %v255 = vpop.f32.mrf.mxu0
    %v256 = vadd.f32 %v52, %v255
    %257 = vmatmul.f32.gmra.mxu0 %v64
    %v258 = vpop.f32.mrf.mxu0
    %v259 = vadd.f32 %v57, %v258
    %260 = vdwg.mxu0
    %v261 = vmax.f32 %v259, 0.0
    %v262 = vsel %vm95, %v261, 0.0
    %s263 = scalar_lea.vmem %s1, 4
    %v264 = vld [vmem:[%s263] sm:$0xf]
    %266 = vrot.lane.b32.xlu0 %v262, 1
    %v267 = vpop.permute.xlu0 %266
    %v269 = vsel %vm102, %v264, %v267
    %270 = vrot.lane.b32.xlu0 %v262, 127
    %v271 = vpop.permute.xlu0 %270
    %274 = vrot.lane.b32.xlu0 %v264, 14
    %v275 = vpop.permute.xlu0 %274
    %v277 = vsel %vm111, %v271, %v275
    %v278 = vsel %vm66, %v262, 0
    %280 = vmatpush.msra.mxu0 0.0
    %281 = vmatpush.msra.mxu0 0.0
    %282 = vmatpush.msra.mxu0 0.0
    %283 = vmatpush.msra.mxu0 0.0
    %284 = vmatpush.msra.mxu0 0.0
    %285 = vmatpush.msra.mxu0 0.0
    %286 = vmatpush.msra.mxu0 0.0
    %287 = vmatpush.msra.mxu0 0.0
    %288 = vmatpush.msra.mxu0 0.0
    %289 = vmatpush.msra.mxu0 0.0
    %290 = vmatpush.msra.mxu0 0.0
    %291 = vmatpush.msra.mxu0 0.0
    %292 = vmatpush.msra.mxu0 0.0
    %293 = vmatpush.msra.mxu0 0.0
    %294 = vmatpush.msra.mxu0 0.0
    %295 = vmatpush.msra.mxu0 %v278
    %296 = vmatmul.f32.gmra.mxu0 %v114
    %v297 = vpop.f32.mrf.mxu0
    %v298 = vadd.f32 0.0, %v297
    %299 = vdwg.mxu0
    %v301 = vsel %vm66, %v269, 0
    %303 = vmatpush.msra.mxu0 0.0
    %304 = vmatpush.msra.mxu0 0.0
    %305 = vmatpush.msra.mxu0 0.0
    %306 = vmatpush.msra.mxu0 0.0
    %307 = vmatpush.msra.mxu0 0.0
    %308 = vmatpush.msra.mxu0 0.0
    %309 = vmatpush.msra.mxu0 0.0
    %310 = vmatpush.msra.mxu0 0.0
    %311 = vmatpush.msra.mxu0 0.0
    %312 = vmatpush.msra.mxu0 0.0
    %313 = vmatpush.msra.mxu0 0.0
    %314 = vmatpush.msra.mxu0 0.0
    %315 = vmatpush.msra.mxu0 0.0
    %316 = vmatpush.msra.mxu0 0.0
    %317 = vmatpush.msra.mxu0 0.0
    %318 = vmatpush.msra.mxu0 %v301
    %319 = vmatmul.f32.gmra.mxu0 %v139
    %v320 = vpop.f32.mrf.mxu0
    %v321 = vadd.f32 %v298, %v320
    %322 = vdwg.mxu0
    %v324 = vsel %vm66, %v277, 0
    %326 = vmatpush.msra.mxu0 0.0
    %327 = vmatpush.msra.mxu0 0.0
    %328 = vmatpush.msra.mxu0 0.0
    %329 = vmatpush.msra.mxu0 0.0
    %330 = vmatpush.msra.mxu0 0.0
    %331 = vmatpush.msra.mxu0 0.0
    %332 = vmatpush.msra.mxu0 0.0
    %333 = vmatpush.msra.mxu0 0.0
    %334 = vmatpush.msra.mxu0 0.0
    %335 = vmatpush.msra.mxu0 0.0
    %336 = vmatpush.msra.mxu0 0.0
    %337 = vmatpush.msra.mxu0 0.0
    %338 = vmatpush.msra.mxu0 0.0
    %339 = vmatpush.msra.mxu0 0.0
    %340 = vmatpush.msra.mxu0 0.0
    %341 = vmatpush.msra.mxu0 %v324
    %342 = vmatmul.f32.gmra.mxu0 %v165
    %v343 = vpop.f32.mrf.mxu0
    %v344 = vadd.f32 0.0, %v343
    %345 = vdwg.mxu0
    %v346 = vadd.f32 %v321, %v344
    %v347 = vadd.f32 %v346, %v194
    %v348 = vmax.f32 %v347, 0.0
    %v350 = vsel %vm66, %v348, 0
    %352 = vmatpush.msra.mxu0 0.0
    %353 = vmatpush.msra.mxu0 0.0
    %354 = vmatpush.msra.mxu0 0.0
    %355 = vmatpush.msra.mxu0 0.0
    %356 = vmatpush.msra.mxu0 0.0
    %357 = vmatpush.msra.mxu0 0.0
    %358 = vmatpush.msra.mxu0 0.0
    %359 = vmatpush.msra.mxu0 0.0
    %360 = vmatpush.msra.mxu0 0.0
    %361 = vmatpush.msra.mxu0 0.0
    %362 = vmatpush.msra.mxu0 0.0
    %363 = vmatpush.msra.mxu0 0.0
    %364 = vmatpush.msra.mxu0 0.0
    %365 = vmatpush.msra.mxu0 0.0
    %366 = vmatpush.msra.mxu0 0.0
    %367 = vmatpush.msra.mxu0 %v350
    %368 = vmatmul.f32.gmra.mxu0 %v204
    %v369 = vpop.f32.mrf.mxu0
    %v370 = vadd.f32 %v201, %v369
    %371 = vdwg.mxu0
    %v372 = vadd.f32 %v370, %v256
    %v373 = vmax.f32 %v372, 0.0
    %s374 = scalar_lea.vmem [#allocation2], 8
    %375 = vst.msk [vmem:[%s374] sm:$0xff] %vm231, %v373
    // Predicated region
    $region34: #{residual_block_forward.1} parent=1 // pred_check
      _
    $region35: #{residual_block_forward.1} parent=1 // pred_check_branch
      %377 = sbr.rel (0) target = $region37
    $region36: #{residual_block_forward.1} parent=1 // pred_region
      %379 = vsyncadd [#allocation3], 0
      %s380 = sshll.u32 [#allocation2], 4
      %s381 = int_to_ptr.vmem [resolvable:$true] %s380
      %s382 = sshll.u32 %s8, 4
      %s383 = int_to_ptr.hbm [resolvable:$true] %s382
      %388 = dma.vmem_to_hbm [thread:$0]  %s381, 256, %s383, [#allocation3], 128, 128, 8
    $region37: #{residual_block_forward.1} parent=1 // pred_fallthru
      _
    // Predicated region
    $region38: #{residual_block_forward.1} parent=1 // pred_check
      _
    $region39: #{residual_block_forward.1} parent=1 // pred_check_branch
      %390 = sbr.rel (0) target = $region41
    $region40: #{residual_block_forward.1} parent=1 // pred_region
      %392 = dma.done [#allocation3], 256
    $region41: #{residual_block_forward.1} parent=1 // pred_fallthru
      _
    %393 = vsyncpa [#allocation3], 1

</llo_original>
